<compile_context>
chip_gen: v5e
topology: v5e:2x2
jax: 0.10.0
libtpu: 0.0.40
codegen_flags: <defaults>
</compile_context>

<pallas_src>
import jax
import jax.numpy as jnp
from jax.experimental import pallas as pl
from jax.experimental.pallas import tpu as pltpu


_LANE_CANDIDATES = (1024, 512, 256, 128)   # lane-dense widths (multiples of 128)
_TILE_BYTES = 4 * 1024 * 1024              # ~4 MiB per tile (v6e/v7x sweet spot)
_VMEM_LIMIT_BYTES = 32 * 1024 * 1024       # headroom for the double-buffered tiles


def _copy_kernel(x_ref, o_ref):
    # Pure pass-through of one lane-dense tile (unmasked full-width stores).
    o_ref[...] = x_ref[...]


def _sublane_multiple(itemsize: int) -> int:
    # Native sublane packing: 8 rows for 32-bit, 16 for 16-bit, 32 for 8-bit.
    return 8 * max(1, 4 // max(1, itemsize))


def reader_read(x: jax.Array) -> jax.Array:
    """One-time defensive device copy of the stored tensor via a lane-dense,
    tiled Pallas copy.  No wrapper-side pad/slice: the kernel output holds
    exactly x.size elements."""
    total = x.size
    if total == 0:
        return x

    itemsize = jnp.dtype(x.dtype).itemsize

    # Pick the widest lane width that divides the flat size exactly.
    lane = next((l for l in _LANE_CANDIDATES if total % l == 0), None)

    if lane is None or itemsize < 1:
        # Odd sizes / exotic dtypes: single full-extent block (no grid, no pad).
        # TODO(synk): sub-byte dtypes (e.g. int4) skip the tiled path entirely.
        return pl.pallas_call(
            _copy_kernel,
            out_shape=jax.ShapeDtypeStruct(x.shape, x.dtype),
            cost_estimate=pl.CostEstimate(
                flops=0, transcendentals=0,
                bytes_accessed=2 * total * max(1, itemsize)),
        )(x)

    rows = total // lane
    x2d = x.reshape(rows, lane)

    sub = _sublane_multiple(itemsize)
    tile_rows = _TILE_BYTES // (lane * itemsize)
    tile_rows = max(sub, (tile_rows // sub) * sub)   # keep sublane-packed
    if tile_rows >= rows:
        tile_rows = rows                             # full-extent block for small inputs

    grid = (pl.cdiv(rows, tile_rows),)

    out2d = pl.pallas_call(
        _copy_kernel,
        out_shape=jax.ShapeDtypeStruct((rows, lane), x2d.dtype),
        grid=grid,
        in_specs=[pl.BlockSpec((tile_rows, lane), lambda i: (i, 0))],
        out_specs=pl.BlockSpec((tile_rows, lane), lambda i: (i, 0)),
        compiler_params=pltpu.CompilerParams(
            # "parallel" is safe on every generation; on v7x, CORE_PARALLEL on
            # this axis would shard row-tiles across both TensorCores.
            dimension_semantics=("parallel",),
            vmem_limit_bytes=_VMEM_LIMIT_BYTES,
        ),
        cost_estimate=pl.CostEstimate(
            flops=0, transcendentals=0, bytes_accessed=2 * total * itemsize),
    )(x2d)

    return out2d.reshape(x.shape)


class Reader:
    """Mirror of the PyTorch module: forward(input) returns the stored tensor."""

    def __init__(self, x=None, defensive_copy: bool = False):
        self.x = x
        self._defensive_copy = defensive_copy
        self._materialized = None
        # TODO(synk): storing self.x is a Python-side side effect with no
        # in-kernel equivalent; if self.x is replaced after the first forward
        # the cached defensive copy is not invalidated (stored tensor assumed
        # immutable by contract).

    def __call__(self, _input=None):
        if self.x is None:
            return None
        if not self._defensive_copy:
            # Fast path (per perf review): pure identity -> zero HBM traffic,
            # no kernel launch.
            return self.x
        if self._materialized is None:
            # Defensive device-side copy: run the Pallas kernel exactly once,
            # cache the result so repeat forwards are free.
            self._materialized = reader_read(self.x)
        return self._materialized


if __name__ == "__main__":
    key = jax.random.PRNGKey(0)
    x_stored = jax.random.normal(key, (2, 4, 16, 16), dtype=jnp.float32)
    dummy_in = jnp.zeros((2, 4, 16, 16), dtype=jnp.float32)

    # Default (fastest) path: identity, no kernel, no HBM traffic.
    reader = Reader(x_stored)
    y = reader(dummy_in)
    assert y is x_stored

    # Defensive-copy path: exercise the Pallas copy kernel once.
    reader_copy = Reader(x_stored, defensive_copy=True)
    yc = reader_copy(dummy_in)
    jax.block_until_ready(yc)
    assert yc.shape == x_stored.shape and yc.dtype == x_stored.dtype
    assert jnp.array_equal(yc, x_stored)

    yc2 = reader_copy(dummy_in)   # hot path: cached, zero extra HBM traffic
    assert yc2 is yc

    print("KERNEL_OK")
</pallas_src>

<mosaic_0001>
module attributes {stable_mosaic.version = 11 : i64} {
  func.func @_copy_kernel(%arg0: i32, %arg1: memref<2x1024xf32, #tpu.memory_space<vmem>>, %arg2: memref<2x1024xf32, #tpu.memory_space<vmem>>) attributes {dimension_semantics = [#tpu.dimension_semantics<parallel>], iteration_bounds = array<i64: 1>, scalar_prefetch = 0 : i64, scratch_operands = 0 : i64, tpu.core_type = #tpu.core_type<tc>, window_params = [{transform_indices = @transform_0, window_bounds = array<i64: 2, 1024>}, {transform_indices = @transform_1, window_bounds = array<i64: 2, 1024>}]} {
    %c0 = arith.constant 0 : index
    %c0_0 = arith.constant 0 : index
    %0 = vector.load %arg1[%c0, %c0_0] : memref<2x1024xf32, #tpu.memory_space<vmem>>, vector<2x1024xf32>
    %c0_1 = arith.constant 0 : index
    %c0_2 = arith.constant 0 : index
    %1 = vector.load %arg2[%c0_1, %c0_2] : memref<2x1024xf32, #tpu.memory_space<vmem>>, vector<2x1024xf32>
    tpu.vector_store %arg2[%c0_1, %c0_2], %0 {strides = array<i32>} : memref<2x1024xf32, #tpu.memory_space<vmem>>, vector<2x1024xf32>,
    return
  }
  func.func @transform_0(%arg0: i32) -> (i32, i32) {
    %c0_i32 = arith.constant 0 : i32
    %c0_i32_0 = arith.constant 0 : i32
    return %arg0, %c0_i32 : i32, i32
  }
  func.func @transform_1(%arg0: i32) -> (i32, i32) {
    %c0_i32 = arith.constant 0 : i32
    %c0_i32_0 = arith.constant 0 : i32
    return %arg0, %c0_i32 : i32, i32
  }
}

</mosaic_0001>

<llo_original>
// kernel: tpu_custom_call.1
$region0: #{tpu_custom_call.1}
  #allocation0 [shape = 'u32[]', space=smem, size = 0x4, offset = 0x4, fixed_abs, tag = 'smem constant byte address 0x4 - core index']
  #allocation1 [shape = 'u32[72,128]{1,0:T(1,128)}', space=vmem, size = 0x9000, scoped, tag = 'internal scratch']
  %s0 = inlined_call_operand.hbm [shape: f32[2,1024], index: 0, kind: input, shape index: {}]
  %s1 = inlined_call_operand.hbm [shape: f32[2,1024], index: 1, kind: output, shape index: {}]
  %s2 = sld [smem:[#allocation0]]
  $region18: #{tpu_custom_call.1} parent=0
    _
  %s4 = ssub.s32 1, %s2
  %s5 = scalar_select 0, %s4, %s2
  $region1: #{tpu_custom_call.1} parent=0
    #allocation2 [shape = 'u8[8192]{0}', space=vmem, size = 0x2000, scoped, tag = 'input window, operand 0, single buffered']
    #allocation3 [shape = 's32[1]{0}', space=sflag, size = 0x4, scoped, tag = 'scoped memory for tpu_custom_call.1']
    #allocation4 [shape = 's32[1]{0}', space=sflag, size = 0x4, scoped, tag = 'scoped memory for tpu_custom_call.1']
    #allocation5 [shape = 'u8[8192]{0}', space=vmem, size = 0x2000, scoped, tag = 'output window, operand 0, single buffered']
    %6 = vsyncpa [#allocation3], 0
    %7 = vsyncpa [#allocation4], 0
    // Predicated region
    $region2: #{tpu_custom_call.1} parent=1 // pred_check
      _
    $region3: #{tpu_custom_call.1} parent=1 // pred_check_branch
      %9 = sbr.rel (0) target = $region5
    $region4: #{tpu_custom_call.1} parent=1 // pred_region
      %11 = vsyncadd [#allocation3], 0
      %s13 = sshll.u32 %s0, 4
      %s14 = int_to_ptr.hbm [resolvable:$true] %s13
      %s15 = sshll.u32 [#allocation2], 4
      %s16 = int_to_ptr.vmem [resolvable:$true] %s15
      %18 = dma.hbm_to_vmem [thread:$0]  %s14, 256, %s16, [#allocation3]
    $region5: #{tpu_custom_call.1} parent=1 // pred_fallthru
      _
    // Predicated region
    $region6: #{tpu_custom_call.1} parent=1 // pred_check
      _
    $region7: #{tpu_custom_call.1} parent=1 // pred_check_branch
      %20 = sbr.rel (0) target = $region9
    $region8: #{tpu_custom_call.1} parent=1 // pred_region
      %22 = dma.done [#allocation3], 256
    $region9: #{tpu_custom_call.1} parent=1 // pred_fallthru
      _
    %v23 = vld [vmem:[#allocation2] sm:$0xff]
    %v24 = vld [vmem:[#allocation2 + $0x8] sm:$0xff]
    %25 = vst [vmem:[#allocation5] sm:$0xff] %v23
    %26 = vst [vmem:[#allocation5 + $0x8] sm:$0xff] %v24
    // Predicated region
    $region10: #{tpu_custom_call.1} parent=1 // pred_check
      _
    $region11: #{tpu_custom_call.1} parent=1 // pred_check_branch
      %28 = sbr.rel (0) target = $region13
    $region12: #{tpu_custom_call.1} parent=1 // pred_region
      %30 = vsyncadd [#allocation4], 0
      %s32 = sshll.u32 [#allocation5], 4
      %s33 = int_to_ptr.vmem [resolvable:$true] %s32
      %s34 = sshll.u32 %s1, 4
      %s35 = int_to_ptr.hbm [resolvable:$true] %s34
      %37 = dma.vmem_to_hbm [thread:$0]  %s33, 256, %s35, [#allocation4]
    $region13: #{tpu_custom_call.1} parent=1 // pred_fallthru
      _
    // Predicated region
    $region14: #{tpu_custom_call.1} parent=1 // pred_check
      _
    $region15: #{tpu_custom_call.1} parent=1 // pred_check_branch
      %39 = sbr.rel (0) target = $region17
    $region16: #{tpu_custom_call.1} parent=1 // pred_region
      %41 = dma.done [#allocation4], 256
    $region17: #{tpu_custom_call.1} parent=1 // pred_fallthru
      _
    %42 = vsyncpa [#allocation3], 1
    %43 = vsyncpa [#allocation4], 1

</llo_original>
